<compile_context>
chip_gen: v7x
topology: tpu7x:2x2x1
jax: 0.10.0
libtpu: 0.0.40
codegen_flags: <defaults>
</compile_context>

<pallas_src>
import jax
import jax.numpy as jnp
from jax.experimental import pallas as pl
from jax.experimental.pallas import tpu as pltpu


def _round_up(n: int, m: int) -> int:
    return ((n + m - 1) // m) * m


def mlp_kernel(x_ref, w1_ref, b1_ref, w2_ref, b2_ref, o_ref):
    # Layer 1: bf16 operands on the MXU (weights already bf16), f32 accumulate;
    # bias/ReLU in f32 on the VPU.
    h = jnp.dot(
        x_ref[...].astype(jnp.bfloat16),
        w1_ref[...],                       # (D_in, H_PAD) bf16, VMEM-resident
        preferred_element_type=jnp.float32,
    )
    h = jnp.maximum(h + b1_ref[...], 0.0)  # (TILE_B, H_PAD) + (1, H_PAD)

    # Layer 2: K=H_PAD=128 contraction, O_PAD=128 output -> fully lane-dense.
    y = jnp.dot(
        h.astype(jnp.bfloat16),
        w2_ref[...],                       # (H_PAD, O_PAD) bf16, VMEM-resident
        preferred_element_type=jnp.float32,
    )
    o_ref[...] = (y + b2_ref[...]).astype(o_ref.dtype)   # bf16 lane-dense store


def prepare_params(w1, b1, w2, b2, *, h_pad: int = 128, o_pad: int = 128):
    """One-time parameter prep: pad H->h_pad / O->o_pad with zeros and cast
    weights to bf16. Padding is exact (zero rows/cols contribute nothing)."""
    D_in, H = w1.shape
    O = w2.shape[-1]
    w1p = jnp.zeros((D_in, h_pad), jnp.bfloat16).at[:, :H].set(w1.astype(jnp.bfloat16))
    b1p = jnp.zeros((1, h_pad), jnp.float32).at[:, :H].set(b1.reshape(1, H))
    w2p = jnp.zeros((h_pad, o_pad), jnp.bfloat16).at[:H, :O].set(w2.astype(jnp.bfloat16))
    b2p = jnp.zeros((1, o_pad), jnp.float32).at[:, :O].set(b2.reshape(1, O))
    return (w1p, b1p, w2p, b2p, O)


def _choose_tile(b_rounded: int, max_tile_b: int) -> int:
    # Prefer >=2 grid steps (v7x megacore sharding) only when each step still
    # has a large (>=512-row) tile; otherwise run one big step (fewer ~0.35 us
    # per-step overheads on v5e/v6e, which have a single TensorCore anyway).
    if b_rounded >= 2 * 512:
        return min(max_tile_b, _round_up(pl.cdiv(b_rounded, 2), 8))
    return min(max_tile_b, b_rounded)


def mlp_forward(x, params, *, max_tile_b: int = 1024):
    """y = relu(x @ w1 + b1) @ w2 + b2 in one fused Pallas kernel.

    x:      (B, D_in) f32
    params: output of prepare_params (padded/bf16 weights, f32 biases).
    Returns (B, O) f32.
    """
    w1p, b1p, w2p, b2p, O = params
    B, D_in = x.shape
    H_PAD = w1p.shape[1]
    O_PAD = w2p.shape[1]

    # Batch tiling: 8-aligned, single step for small B, >=2 steps for large B.
    b8 = _round_up(max(B, 8), 8)
    tb = _choose_tile(b8, max_tile_b)
    B_pad = _round_up(b8, tb)
    if B_pad != B:
        x = jnp.pad(x, ((0, B_pad - B), (0, 0)))

    grid = (B_pad // tb,)

    # Advisory estimate of the actual (padded) kernel work / HBM traffic.
    cost = pl.CostEstimate(
        flops=2 * B_pad * (D_in * H_PAD + H_PAD * O_PAD),
        transcendentals=0,
        bytes_accessed=(
            B_pad * D_in * 4            # x (f32)
            + w1p.size * 2 + b1p.size * 4
            + w2p.size * 2 + b2p.size * 4
            + B_pad * O_PAD * 2         # bf16 padded output
        ),
    )

    out_padded = pl.pallas_call(
        mlp_kernel,
        out_shape=jax.ShapeDtypeStruct((B_pad, O_PAD), jnp.bfloat16),
        grid=grid,
        in_specs=[
            pl.BlockSpec((tb, D_in), lambda i: (i, 0)),      # x tile (streams over B)
            pl.BlockSpec((D_in, H_PAD), lambda i: (0, 0)),   # W1 bf16 (VMEM-resident)
            pl.BlockSpec((1, H_PAD), lambda i: (0, 0)),      # b1 f32 (VMEM-resident)
            pl.BlockSpec((H_PAD, O_PAD), lambda i: (0, 0)),  # W2 bf16 (VMEM-resident)
            pl.BlockSpec((1, O_PAD), lambda i: (0, 0)),      # b2 f32 (VMEM-resident)
        ],
        out_specs=pl.BlockSpec((tb, O_PAD), lambda i: (i, 0)),
        compiler_params=pltpu.CompilerParams(
            dimension_semantics=("parallel",),
        ),
        cost_estimate=cost,
    )(x, w1p, b1p, w2p, b2p)

    return out_padded[:B, :O].astype(jnp.float32)


if __name__ == "__main__":
    B = 512        # batch
    D_IN = 32      # input_size
    H = 64         # hidden features (nn.Linear(input_size, 64))
    O = 2          # output features (nn.Linear(64, 2))

    key = jax.random.PRNGKey(0)
    kx, kw1, kb1, kw2, kb2 = jax.random.split(key, 5)

    x = jax.random.normal(kx, (B, D_IN), dtype=jnp.float32)

    # PyTorch-style uniform(-1/sqrt(fan_in), 1/sqrt(fan_in)) init.
    lim1 = 1.0 / jnp.sqrt(jnp.float32(D_IN))
    w1 = jax.random.uniform(kw1, (D_IN, H), jnp.float32, -lim1, lim1)
    b1 = jax.random.uniform(kb1, (1, H), jnp.float32, -lim1, lim1)
    lim2 = 1.0 / jnp.sqrt(jnp.float32(H))
    w2 = jax.random.uniform(kw2, (H, O), jnp.float32, -lim2, lim2)
    b2 = jax.random.uniform(kb2, (1, O), jnp.float32, -lim2, lim2)

    # One-time parameter prep (padding + bf16 cast) outside the per-call path.
    params = prepare_params(w1, b1, w2, b2)

    out = mlp_forward(x, params)
    out = jax.block_until_ready(out)
    assert out.shape == (B, O)

    # Reference 1: emulate the kernel's bf16-operand / f32-accumulate math,
    # including the final bf16 output rounding.
    xb = x.astype(jnp.bfloat16)
    w1b = w1.astype(jnp.bfloat16)
    h_ref = jnp.maximum(
        jnp.dot(xb, w1b, preferred_element_type=jnp.float32) + b1, 0.0)
    y_ref = (jnp.dot(h_ref.astype(jnp.bfloat16), w2.astype(jnp.bfloat16),
                     preferred_element_type=jnp.float32) + b2)
    ref_bf16 = y_ref.astype(jnp.bfloat16).astype(jnp.float32)
    assert jnp.allclose(out, ref_bf16, atol=1e-2, rtol=1e-2)

    # Reference 2: pure-f32 PyTorch-equivalent forward (looser tol: bf16
    # operands + bf16 output rounding).
    ref_f32 = jnp.maximum(x @ w1 + b1, 0.0) @ w2 + b2
    assert jnp.allclose(out, ref_f32, atol=5e-2, rtol=5e-2)

    print("KERNEL_OK")
</pallas_src>

<mosaic_0001>
module attributes {stable_mosaic.version = 11 : i64} {
  func.func @mlp_kernel(%arg0: i32, %arg1: memref<512x32xf32, #tpu.memory_space<vmem>>, %arg2: memref<32x128xbf16, #tpu.memory_space<vmem>>, %arg3: memref<1x128xf32, #tpu.memory_space<vmem>>, %arg4: memref<128x128xbf16, #tpu.memory_space<vmem>>, %arg5: memref<1x128xf32, #tpu.memory_space<vmem>>, %arg6: memref<512x128xbf16, #tpu.memory_space<vmem>>) attributes {dimension_semantics = [#tpu.dimension_semantics<parallel>], iteration_bounds = array<i64: 1>, scalar_prefetch = 0 : i64, scratch_operands = 0 : i64, tpu.core_type = #tpu.core_type<tc>, window_params = [{transform_indices = @transform_0, window_bounds = array<i64: 512, 32>}, {pipeline_mode = #tpu.pipeline_mode<synchronous>, transform_indices = @transform_1, window_bounds = array<i64: 32, 128>}, {pipeline_mode = #tpu.pipeline_mode<synchronous>, transform_indices = @transform_2, window_bounds = array<i64: 1, 128>}, {pipeline_mode = #tpu.pipeline_mode<synchronous>, transform_indices = @transform_3, window_bounds = array<i64: 128, 128>}, {pipeline_mode = #tpu.pipeline_mode<synchronous>, transform_indices = @transform_4, window_bounds = array<i64: 1, 128>}, {transform_indices = @transform_5, window_bounds = array<i64: 512, 128>}]} {
    %c0 = arith.constant 0 : index
    %c0_0 = arith.constant 0 : index
    %0 = vector.load %arg1[%c0, %c0_0] : memref<512x32xf32, #tpu.memory_space<vmem>>, vector<512x32xf32>
    %1 = arith.truncf %0 : vector<512x32xf32> to vector<512x32xbf16>
    %c0_1 = arith.constant 0 : index
    %c0_2 = arith.constant 0 : index
    %2 = vector.load %arg2[%c0_1, %c0_2] : memref<32x128xbf16, #tpu.memory_space<vmem>>, vector<32x128xbf16>
    %cst = arith.constant dense<0.000000e+00> : vector<512x128xf32>
    %3 = tpu.matmul %1, %2, %cst {dimension_numbers = #tpu.dot_dimension_numbers<[1], [0], [0], [1], [0, 0, 1, 1], [], []>} : vector<512x32xbf16>, vector<32x128xbf16>, vector<512x128xf32> -> vector<512x128xf32>
    %c0_3 = arith.constant 0 : index
    %c0_4 = arith.constant 0 : index
    %4 = vector.load %arg3[%c0_3, %c0_4] : memref<1x128xf32, #tpu.memory_space<vmem>>, vector<1x128xf32>
    %5 = vector.broadcast %4 : vector<1x128xf32> to vector<512x128xf32>
    %6 = arith.addf %3, %5 : vector<512x128xf32>
    %cst_5 = arith.constant 0.000000e+00 : f32
    %7 = vector.broadcast %cst_5 : f32 to vector<512x128xf32>
    %8 = arith.maximumf %6, %7 : vector<512x128xf32>
    %9 = arith.truncf %8 : vector<512x128xf32> to vector<512x128xbf16>
    %c0_6 = arith.constant 0 : index
    %c0_7 = arith.constant 0 : index
    %10 = vector.load %arg4[%c0_6, %c0_7] : memref<128x128xbf16, #tpu.memory_space<vmem>>, vector<128x128xbf16>
    %cst_8 = arith.constant dense<0.000000e+00> : vector<512x128xf32>
    %11 = tpu.matmul %9, %10, %cst_8 {dimension_numbers = #tpu.dot_dimension_numbers<[1], [0], [0], [1], [0, 0, 1, 1], [], []>} : vector<512x128xbf16>, vector<128x128xbf16>, vector<512x128xf32> -> vector<512x128xf32>
    %c0_9 = arith.constant 0 : index
    %c0_10 = arith.constant 0 : index
    %12 = vector.load %arg5[%c0_9, %c0_10] : memref<1x128xf32, #tpu.memory_space<vmem>>, vector<1x128xf32>
    %13 = vector.broadcast %12 : vector<1x128xf32> to vector<512x128xf32>
    %14 = arith.addf %11, %13 : vector<512x128xf32>
    %15 = arith.truncf %14 : vector<512x128xf32> to vector<512x128xbf16>
    %c0_11 = arith.constant 0 : index
    %c0_12 = arith.constant 0 : index
    %16 = vector.load %arg6[%c0_11, %c0_12] : memref<512x128xbf16, #tpu.memory_space<vmem>>, vector<512x128xbf16>
    tpu.vector_store %arg6[%c0_11, %c0_12], %15 {strides = array<i32>} : memref<512x128xbf16, #tpu.memory_space<vmem>>, vector<512x128xbf16>,
    return
  }
  func.func @transform_0(%arg0: i32) -> (i32, i32) {
    %c0_i32 = arith.constant 0 : i32
    %c0_i32_0 = arith.constant 0 : i32
    return %arg0, %c0_i32 : i32, i32
  }
  func.func @transform_1(%arg0: i32) -> (i32, i32) {
    %c0_i32 = arith.constant 0 : i32
    %c0_i32_0 = arith.constant 0 : i32
    %c0_i32_1 = arith.constant 0 : i32
    return %c0_i32, %c0_i32_0 : i32, i32
  }
  func.func @transform_2(%arg0: i32) -> (i32, i32) {
    %c0_i32 = arith.constant 0 : i32
    %c0_i32_0 = arith.constant 0 : i32
    %c0_i32_1 = arith.constant 0 : i32
    return %c0_i32, %c0_i32_0 : i32, i32
  }
  func.func @transform_3(%arg0: i32) -> (i32, i32) {
    %c0_i32 = arith.constant 0 : i32
    %c0_i32_0 = arith.constant 0 : i32
    %c0_i32_1 = arith.constant 0 : i32
    return %c0_i32, %c0_i32_0 : i32, i32
  }
  func.func @transform_4(%arg0: i32) -> (i32, i32) {
    %c0_i32 = arith.constant 0 : i32
    %c0_i32_0 = arith.constant 0 : i32
    %c0_i32_1 = arith.constant 0 : i32
    return %c0_i32, %c0_i32_0 : i32, i32
  }
  func.func @transform_5(%arg0: i32) -> (i32, i32) {
    %c0_i32 = arith.constant 0 : i32
    %c0_i32_0 = arith.constant 0 : i32
    return %arg0, %c0_i32 : i32, i32
  }
}

</mosaic_0001>

<llo_original>
// kernel: tpu_custom_call.1
$region0: #{tpu_custom_call.1}
  #allocation0 [shape = 'u32[]', space=smem, size = 0x4, offset = 0x4, fixed_abs, tag = 'smem constant byte address 0x4 - core index']
  #allocation1 [shape = 'u32[144,128]{1,0:T(1,128)}', space=vmem, size = 0x12000, scoped, tag = 'internal scratch']
  %s0 = inlined_call_operand.vmem [shape: f32[512,32], index: 0, kind: input, shape index: {}]
  %s1 = inlined_call_operand.vmem [shape: bf16[32,128], index: 1, kind: input, shape index: {}]
  %s2 = inlined_call_operand.vmem [shape: f32[1,128], index: 2, kind: input, shape index: {}]
  %s3 = inlined_call_operand.vmem [shape: bf16[128,128], index: 3, kind: input, shape index: {}]
  %s4 = inlined_call_operand.vmem [shape: f32[1,128], index: 4, kind: input, shape index: {}]
  %s5 = inlined_call_operand.hbm [shape: bf16[512,128], index: 5, kind: output, shape index: {}]
  %s6 = sld [smem:[#allocation0]]
  $region30: #{tpu_custom_call.1} parent=0
    _
  %s8 = ssub.s32 1, %s6
  %s9 = scalar_select 0, %s8, %s6
  $region1: #{tpu_custom_call.1} parent=0
    #allocation2 [shape = 'u8[131072]{0}', space=vmem, size = 0x20000, scoped, tag = 'output window, operand 0, single buffered']
    #allocation3 [shape = 's32[1]{0}', space=sflag, size = 0x4, scoped, tag = 'scoped memory for tpu_custom_call.1']
    %10 = vsyncpa [#allocation3], 0
    // Predicated region
    $region2: #{tpu_custom_call.1} parent=1 // pred_check
      _
    $region3: #{tpu_custom_call.1} parent=1 // pred_check_branch
      %12 = sbr.rel (0) target = $region5
    $region4: #{tpu_custom_call.1} parent=1 // pred_region
      _
    $region5: #{tpu_custom_call.1} parent=1 // pred_fallthru
      _
    // Predicated region
    $region6: #{tpu_custom_call.1} parent=1 // pred_check
      _
    $region7: #{tpu_custom_call.1} parent=1 // pred_check_branch
      %14 = sbr.rel (0) target = $region9
    $region8: #{tpu_custom_call.1} parent=1 // pred_region
      _
    $region9: #{tpu_custom_call.1} parent=1 // pred_fallthru
      _
    // Predicated region
    $region10: #{tpu_custom_call.1} parent=1 // pred_check
      _
    $region11: #{tpu_custom_call.1} parent=1 // pred_check_branch
      %16 = sbr.rel (0) target = $region13
    $region12: #{tpu_custom_call.1} parent=1 // pred_region
      _
    $region13: #{tpu_custom_call.1} parent=1 // pred_fallthru
      _
    // Predicated region
    $region14: #{tpu_custom_call.1} parent=1 // pred_check
      _
    $region15: #{tpu_custom_call.1} parent=1 // pred_check_branch
      %18 = sbr.rel (0) target = $region17
    $region16: #{tpu_custom_call.1} parent=1 // pred_region
      _
    $region17: #{tpu_custom_call.1} parent=1 // pred_fallthru
      _
    // Predicated region
    $region18: #{tpu_custom_call.1} parent=1 // pred_check
      _
    $region19: #{tpu_custom_call.1} parent=1 // pred_check_branch
      %20 = sbr.rel (0) target = $region21
    $region20: #{tpu_custom_call.1} parent=1 // pred_region
      _
    $region21: #{tpu_custom_call.1} parent=1 // pred_fallthru
      _
    %v22 = vld [vmem:[%s0] sm:$0xff]
    %v23 = vld [vmem:[%s0 + $0x8] sm:$0xff]
    %v24 = vld [vmem:[%s0 + $0x10] sm:$0xff]
    %v25 = vld [vmem:[%s0 + $0x18] sm:$0xff]
    %v26 = vld [vmem:[%s0 + $0x20] sm:$0xff]
    %v27 = vld [vmem:[%s0 + $0x28] sm:$0xff]
    %v28 = vld [vmem:[%s0 + $0x30] sm:$0xff]
    %v29 = vld [vmem:[%s0 + $0x38] sm:$0xff]
    %v30 = vld [vmem:[%s0 + $0x40] sm:$0xff]
    %v31 = vld [vmem:[%s0 + $0x48] sm:$0xff]
    %v32 = vld [vmem:[%s0 + $0x50] sm:$0xff]
    %v33 = vld [vmem:[%s0 + $0x58] sm:$0xff]
    %v34 = vld [vmem:[%s0 + $0x60] sm:$0xff]
    %v35 = vld [vmem:[%s0 + $0x68] sm:$0xff]
    %v36 = vld [vmem:[%s0 + $0x70] sm:$0xff]
    %v37 = vld [vmem:[%s0 + $0x78] sm:$0xff]
    %v38 = vld [vmem:[%s0 + $0x80] sm:$0xff]
    %v39 = vld [vmem:[%s0 + $0x88] sm:$0xff]
    %v40 = vld [vmem:[%s0 + $0x90] sm:$0xff]
    %v41 = vld [vmem:[%s0 + $0x98] sm:$0xff]
    %v42 = vld [vmem:[%s0 + $0xa0] sm:$0xff]
    %v43 = vld [vmem:[%s0 + $0xa8] sm:$0xff]
    %v44 = vld [vmem:[%s0 + $0xb0] sm:$0xff]
    %v45 = vld [vmem:[%s0 + $0xb8] sm:$0xff]
    %v46 = vld [vmem:[%s0 + $0xc0] sm:$0xff]
    %v47 = vld [vmem:[%s0 + $0xc8] sm:$0xff]
    %v48 = vld [vmem:[%s0 + $0xd0] sm:$0xff]
    %v49 = vld [vmem:[%s0 + $0xd8] sm:$0xff]
    %v50 = vld [vmem:[%s0 + $0xe0] sm:$0xff]
    %v51 = vld [vmem:[%s0 + $0xe8] sm:$0xff]
    %v52 = vld [vmem:[%s0 + $0xf0] sm:$0xff]
    %v53 = vld [vmem:[%s0 + $0xf8] sm:$0xff]
    %v54 = vld [vmem:[%s0 + $0x100] sm:$0xff]
    %v55 = vld [vmem:[%s0 + $0x108] sm:$0xff]
    %v56 = vld [vmem:[%s0 + $0x110] sm:$0xff]
    %v57 = vld [vmem:[%s0 + $0x118] sm:$0xff]
    %v58 = vld [vmem:[%s0 + $0x120] sm:$0xff]
    %v59 = vld [vmem:[%s0 + $0x128] sm:$0xff]
    %v60 = vld [vmem:[%s0 + $0x130] sm:$0xff]
    %v61 = vld [vmem:[%s0 + $0x138] sm:$0xff]
    %v62 = vld [vmem:[%s0 + $0x140] sm:$0xff]
    %v63 = vld [vmem:[%s0 + $0x148] sm:$0xff]
    %v64 = vld [vmem:[%s0 + $0x150] sm:$0xff]
    %v65 = vld [vmem:[%s0 + $0x158] sm:$0xff]
    %v66 = vld [vmem:[%s0 + $0x160] sm:$0xff]
    %v67 = vld [vmem:[%s0 + $0x168] sm:$0xff]
    %v68 = vld [vmem:[%s0 + $0x170] sm:$0xff]
    %v69 = vld [vmem:[%s0 + $0x178] sm:$0xff]
    %v70 = vld [vmem:[%s0 + $0x180] sm:$0xff]
    %v71 = vld [vmem:[%s0 + $0x188] sm:$0xff]
    %v72 = vld [vmem:[%s0 + $0x190] sm:$0xff]
    %v73 = vld [vmem:[%s0 + $0x198] sm:$0xff]
    %v74 = vld [vmem:[%s0 + $0x1a0] sm:$0xff]
    %v75 = vld [vmem:[%s0 + $0x1a8] sm:$0xff]
    %v76 = vld [vmem:[%s0 + $0x1b0] sm:$0xff]
    %v77 = vld [vmem:[%s0 + $0x1b8] sm:$0xff]
    %v78 = vld [vmem:[%s0 + $0x1c0] sm:$0xff]
    %v79 = vld [vmem:[%s0 + $0x1c8] sm:$0xff]
    %v80 = vld [vmem:[%s0 + $0x1d0] sm:$0xff]
    %v81 = vld [vmem:[%s0 + $0x1d8] sm:$0xff]
    %v82 = vld [vmem:[%s0 + $0x1e0] sm:$0xff]
    %v83 = vld [vmem:[%s0 + $0x1e8] sm:$0xff]
    %v84 = vld [vmem:[%s0 + $0x1f0] sm:$0xff]
    %v85 = vld [vmem:[%s0 + $0x1f8] sm:$0xff]
    %v86 = vpack.c.bf16 %v23, %v22
    %v87 = vpack.c.bf16 %v25, %v24
    %v88 = vpack.c.bf16 %v27, %v26
    %v89 = vpack.c.bf16 %v29, %v28
    %v90 = vpack.c.bf16 %v31, %v30
    %v91 = vpack.c.bf16 %v33, %v32
    %v92 = vpack.c.bf16 %v35, %v34
    %v93 = vpack.c.bf16 %v37, %v36
    %v94 = vpack.c.bf16 %v39, %v38
    %v95 = vpack.c.bf16 %v41, %v40
    %v96 = vpack.c.bf16 %v43, %v42
    %v97 = vpack.c.bf16 %v45, %v44
    %v98 = vpack.c.bf16 %v47, %v46
    %v99 = vpack.c.bf16 %v49, %v48
    %v100 = vpack.c.bf16 %v51, %v50
    %v101 = vpack.c.bf16 %v53, %v52
    %v102 = vpack.c.bf16 %v55, %v54
    %v103 = vpack.c.bf16 %v57, %v56
    %v104 = vpack.c.bf16 %v59, %v58
    %v105 = vpack.c.bf16 %v61, %v60
    %v106 = vpack.c.bf16 %v63, %v62
    %v107 = vpack.c.bf16 %v65, %v64
    %v108 = vpack.c.bf16 %v67, %v66
    %v109 = vpack.c.bf16 %v69, %v68
    %v110 = vpack.c.bf16 %v71, %v70
    %v111 = vpack.c.bf16 %v73, %v72
    %v112 = vpack.c.bf16 %v75, %v74
    %v113 = vpack.c.bf16 %v77, %v76
    %v114 = vpack.c.bf16 %v79, %v78
    %v115 = vpack.c.bf16 %v81, %v80
    %v116 = vpack.c.bf16 %v83, %v82
    %v117 = vpack.c.bf16 %v85, %v84
    %v118 = vld [vmem:[%s1] sm:$0xf]
    %v119 = vld [vmem:[%s1 + $0x4] sm:$0xf]
    %v120 = vld [vmem:[%s1 + $0x8] sm:$0xf]
    %v121 = vld [vmem:[%s1 + $0xc] sm:$0xf]
    %v122 = vld [vmem:[%s2] sm:$0x1]
    %v124 = vlaneseq
    %v125 = vshrl.u32 %v124, 7
    %v126 = vsub.s32 0, %v125
    %v127 = vrot.slane %v122, %v126
    %v133 = vunpack.c.l.b16 %v118
    %v134 = vunpack.c.l.b16 %v119
    %v135 = vunpack.c.l.b16 %v120
    %v136 = vunpack.c.l.b16 %v121
    %v137 = vpack.c.b16 %v134, %v133
    %v138 = vpack.c.b16 %v136, %v135
    %vm141 = vcmask 261120
    %v143 = vsel %vm141, %v86, 0
    %v146 = vsel %vm141, %v87, 0
    %v149 = vsel %vm141, %v88, 0
    %v152 = vsel %vm141, %v89, 0
    %v155 = vsel %vm141, %v90, 0
    %v158 = vsel %vm141, %v91, 0
    %v161 = vsel %vm141, %v92, 0
    %v164 = vsel %vm141, %v93, 0
    %v167 = vsel %vm141, %v94, 0
    %v170 = vsel %vm141, %v95, 0
    %v173 = vsel %vm141, %v96, 0
    %v176 = vsel %vm141, %v97, 0
    %v179 = vsel %vm141, %v98, 0
    %v182 = vsel %vm141, %v99, 0
    %v185 = vsel %vm141, %v100, 0
    %v188 = vsel %vm141, %v101, 0
    %v191 = vsel %vm141, %v102, 0
    %v194 = vsel %vm141, %v103, 0
    %v197 = vsel %vm141, %v104, 0
    %v200 = vsel %vm141, %v105, 0
    %v203 = vsel %vm141, %v106, 0
    %v206 = vsel %vm141, %v107, 0
    %v209 = vsel %vm141, %v108, 0
    %v212 = vsel %vm141, %v109, 0
    %v215 = vsel %vm141, %v110, 0
    %v218 = vsel %vm141, %v111, 0
    %v221 = vsel %vm141, %v112, 0
    %v224 = vsel %vm141, %v113, 0
    %v227 = vsel %vm141, %v114, 0
    %v230 = vsel %vm141, %v115, 0
    %v233 = vsel %vm141, %v116, 0
    %v236 = vsel %vm141, %v117, 0
    %238 = vmatprep.subr.bf16.mxu0 0
    %239 = vmatpush1.bf16.msra.mxu0 %v137
    %240 = vmatprep.subr.bf16.mxu0 0
    %241 = vmatpush1.bf16.msra.mxu0 %v138
    %242 = vmatprep.subr.bf16.mxu0 0
    %243 = vmatpush1.bf16.msra.mxu0 0
    %244 = vmatprep.subr.bf16.mxu0 0
    %245 = vmatpush1.bf16.msra.mxu0 0
    %246 = vmatprep.subr.bf16.mxu0 0
    %247 = vmatpush1.bf16.msra.mxu0 0
    %248 = vmatprep.subr.bf16.mxu0 0
    %249 = vmatpush1.bf16.msra.mxu0 0
    %250 = vmatprep.subr.bf16.mxu0 0
    %251 = vmatpush1.bf16.msra.mxu0 0
    %252 = vmatprep.subr.bf16.mxu0 0
    %253 = vmatpush1.bf16.msra.mxu0 0
    %254 = vmatprep.subr.bf16.mxu0 0
    %255 = vmatpush1.bf16.msra.mxu0 0
    %256 = vmatprep.subr.bf16.mxu0 0
    %257 = vmatpush1.bf16.msra.mxu0 0
    %258 = vmatprep.subr.bf16.mxu0 0
    %259 = vmatpush1.bf16.msra.mxu0 0
    %260 = vmatprep.subr.bf16.mxu0 0
    %261 = vmatpush1.bf16.msra.mxu0 0
    %262 = vmatprep.subr.bf16.mxu0 0
    %263 = vmatpush1.bf16.msra.mxu0 0
    %264 = vmatprep.subr.bf16.mxu0 0
    %265 = vmatpush1.bf16.msra.mxu0 0
    %266 = vmatprep.subr.bf16.mxu0 0
    %267 = vmatpush1.bf16.msra.mxu0 0
    %268 = vmatprep.subr.bf16.mxu0 0
    %269 = vmatpush1.bf16.msra.mxu0 0
    %270 = vmatprep.mubr.bf16.mxu0 0
    %271 = vmatmul.mubr.bf16.gmra.mrb[0].mxu0 %v143
    %v272 = vpop.f32.mrb[0].mxu0
    %v273 = vadd.f32 %v127, %v272
    %v274 = vpop.f32.mrb[0].mxu0
    %v275 = vpop.f32.mrb[0].mxu0
    %v276 = vadd.f32 %v127, %v275
    %v277 = vpop.f32.mrb[0].mxu0
    %278 = vmatprep.mubr.bf16.mxu0 0
    %279 = vmatmul.mubr.bf16.gmra.mrb[0].mxu0 %v146
    %v280 = vpop.f32.mrb[0].mxu0
    %v281 = vadd.f32 %v127, %v280
    %v282 = vpop.f32.mrb[0].mxu0
    %v283 = vpop.f32.mrb[0].mxu0
    %v284 = vadd.f32 %v127, %v283
    %v285 = vpop.f32.mrb[0].mxu0
    %286 = vmatprep.mubr.bf16.mxu0 0
    %287 = vmatmul.mubr.bf16.gmra.mrb[0].mxu0 %v149
    %v288 = vpop.f32.mrb[0].mxu0
    %v289 = vadd.f32 %v127, %v288
    %v290 = vpop.f32.mrb[0].mxu0
    %v291 = vpop.f32.mrb[0].mxu0
    %v292 = vadd.f32 %v127, %v291
    %v293 = vpop.f32.mrb[0].mxu0
    %294 = vmatprep.mubr.bf16.mxu0 0
    %295 = vmatmul.mubr.bf16.gmra.mrb[0].mxu0 %v152
    %v296 = vpop.f32.mrb[0].mxu0
    %v297 = vadd.f32 %v127, %v296
    %v298 = vpop.f32.mrb[0].mxu0
    %v299 = vpop.f32.mrb[0].mxu0
    %v300 = vadd.f32 %v127, %v299
    %v301 = vpop.f32.mrb[0].mxu0
    %302 = vmatprep.mubr.bf16.mxu0 0
    %303 = vmatmul.mubr.bf16.gmra.mrb[0].mxu0 %v155
    %v304 = vpop.f32.mrb[0].mxu0
    %v305 = vadd.f32 %v127, %v304
    %v306 = vpop.f32.mrb[0].mxu0
    %v307 = vpop.f32.mrb[0].mxu0
    %v308 = vadd.f32 %v127, %v307
    %v309 = vpop.f32.mrb[0].mxu0
    %310 = vmatprep.mubr.bf16.mxu0 0
    %311 = vmatmul.mubr.bf16.gmra.mrb[0].mxu0 %v158
    %v312 = vpop.f32.mrb[0].mxu0
    %v313 = vadd.f32 %v127, %v312
    %v314 = vpop.f32.mrb[0].mxu0
    %v315 = vpop.f32.mrb[0].mxu0
    %v316 = vadd.f32 %v127, %v315
    %v317 = vpop.f32.mrb[0].mxu0
    %318 = vmatprep.mubr.bf16.mxu0 0
    %319 = vmatmul.mubr.bf16.gmra.mrb[0].mxu0 %v161
    %v320 = vpop.f32.mrb[0].mxu0
    %v321 = vadd.f32 %v127, %v320
    %v322 = vpop.f32.mrb[0].mxu0
    %v323 = vpop.f32.mrb[0].mxu0
    %v324 = vadd.f32 %v127, %v323
    %v325 = vpop.f32.mrb[0].mxu0
    %326 = vmatprep.mubr.bf16.mxu0 0
    %327 = vmatmul.mubr.bf16.gmra.mrb[0].mxu0 %v164
    %v328 = vpop.f32.mrb[0].mxu0
    %v329 = vadd.f32 %v127, %v328
    %v330 = vpop.f32.mrb[0].mxu0
    %v331 = vpop.f32.mrb[0].mxu0
    %v332 = vadd.f32 %v127, %v331
    %v333 = vpop.f32.mrb[0].mxu0
    %334 = vmatprep.mubr.bf16.mxu0 0
    %335 = vmatmul.mubr.bf16.gmra.mrb[0].mxu0 %v167
    %v336 = vpop.f32.mrb[0].mxu0
    %v337 = vadd.f32 %v127, %v336
    %v338 = vpop.f32.mrb[0].mxu0
    %v339 = vpop.f32.mrb[0].mxu0
    %v340 = vadd.f32 %v127, %v339
    %v341 = vpop.f32.mrb[0].mxu0
    %342 = vmatprep.mubr.bf16.mxu0 0
    %343 = vmatmul.mubr.bf16.gmra.mrb[0].mxu0 %v170
    %v344 = vpop.f32.mrb[0].mxu0
    %v345 = vadd.f32 %v127, %v344
    %v346 = vpop.f32.mrb[0].mxu0
    %v347 = vpop.f32.mrb[0].mxu0
    %v348 = vadd.f32 %v127, %v347
    %v349 = vpop.f32.mrb[0].mxu0
    %350 = vmatprep.mubr.bf16.mxu0 0
    %351 = vmatmul.mubr.bf16.gmra.mrb[0].mxu0 %v173
    %v352 = vpop.f32.mrb[0].mxu0
    %v353 = vadd.f32 %v127, %v352
    %v354 = vpop.f32.mrb[0].mxu0
    %v355 = vpop.f32.mrb[0].mxu0
    %v356 = vadd.f32 %v127, %v355
    %v357 = vpop.f32.mrb[0].mxu0
    %358 = vmatprep.mubr.bf16.mxu0 0
    %359 = vmatmul.mubr.bf16.gmra.mrb[0].mxu0 %v176
    %v360 = vpop.f32.mrb[0].mxu0
    %v361 = vadd.f32 %v127, %v360
    %v362 = vpop.f32.mrb[0].mxu0
    %v363 = vpop.f32.mrb[0].mxu0
    %v364 = vadd.f32 %v127, %v363
    %v365 = vpop.f32.mrb[0].mxu0
    %366 = vmatprep.mubr.bf16.mxu0 0
    %367 = vmatmul.mubr.bf16.gmra.mrb[0].mxu0 %v179
    %v368 = vpop.f32.mrb[0].mxu0
    %v369 = vadd.f32 %v127, %v368
    %v370 = vpop.f32.mrb[0].mxu0
    %v371 = vpop.f32.mrb[0].mxu0
    %v372 = vadd.f32 %v127, %v371
    %v373 = vpop.f32.mrb[0].mxu0
    %374 = vmatprep.mubr.bf16.mxu0 0
    %375 = vmatmul.mubr.bf16.gmra.mrb[0].mxu0 %v182
    %v376 = vpop.f32.mrb[0].mxu0
    %v377 = vadd.f32 %v127, %v376
    %v378 = vpop.f32.mrb[0].mxu0
    %v379 = vpop.f32.mrb[0].mxu0
    %v380 = vadd.f32 %v127, %v379
    %v381 = vpop.f32.mrb[0].mxu0
    %382 = vmatprep.mubr.bf16.mxu0 0
    %383 = vmatmul.mubr.bf16.gmra.mrb[0].mxu0 %v185
    %v384 = vpop.f32.mrb[0].mxu0
    %v385 = vadd.f32 %v127, %v384
    %v386 = vpop.f32.mrb[0].mxu0
    %v387 = vpop.f32.mrb[0].mxu0
    %v388 = vadd.f32 %v127, %v387
    %v389 = vpop.f32.mrb[0].mxu0
    %390 = vmatprep.mubr.bf16.mxu0 0
    %391 = vmatmul.mubr.bf16.gmra.mrb[0].mxu0 %v188
    %v392 = vpop.f32.mrb[0].mxu0
    %v393 = vadd.f32 %v127, %v392
    %v394 = vpop.f32.mrb[0].mxu0
    %v395 = vpop.f32.mrb[0].mxu0
    %v396 = vadd.f32 %v127, %v395
    %v397 = vpop.f32.mrb[0].mxu0
    %398 = vmatprep.mubr.bf16.mxu0 0
    %399 = vmatmul.mubr.bf16.gmra.mrb[0].mxu0 %v191
    %v400 = vpop.f32.mrb[0].mxu0
    %v401 = vadd.f32 %v127, %v400
    %v402 = vpop.f32.mrb[0].mxu0
    %v403 = vpop.f32.mrb[0].mxu0
    %v404 = vadd.f32 %v127, %v403
    %v405 = vpop.f32.mrb[0].mxu0
    %406 = vmatprep.mubr.bf16.mxu0 0
    %407 = vmatmul.mubr.bf16.gmra.mrb[0].mxu0 %v194
    %v408 = vpop.f32.mrb[0].mxu0
    %v409 = vadd.f32 %v127, %v408
    %v410 = vpop.f32.mrb[0].mxu0
    %v411 = vpop.f32.mrb[0].mxu0
    %v412 = vadd.f32 %v127, %v411
    %v413 = vpop.f32.mrb[0].mxu0
    %414 = vmatprep.mubr.bf16.mxu0 0
    %415 = vmatmul.mubr.bf16.gmra.mrb[0].mxu0 %v197
    %v416 = vpop.f32.mrb[0].mxu0
    %v417 = vadd.f32 %v127, %v416
    %v418 = vpop.f32.mrb[0].mxu0
    %v419 = vpop.f32.mrb[0].mxu0
    %v420 = vadd.f32 %v127, %v419
    %v421 = vpop.f32.mrb[0].mxu0
    %422 = vmatprep.mubr.bf16.mxu0 0
    %423 = vmatmul.mubr.bf16.gmra.mrb[0].mxu0 %v200
    %v424 = vpop.f32.mrb[0].mxu0
    %v425 = vadd.f32 %v127, %v424
    %v426 = vpop.f32.mrb[0].mxu0
    %v427 = vpop.f32.mrb[0].mxu0
    %v428 = vadd.f32 %v127, %v427
    %v429 = vpop.f32.mrb[0].mxu0
    %430 = vmatprep.mubr.bf16.mxu0 0
    %431 = vmatmul.mubr.bf16.gmra.mrb[0].mxu0 %v203
    %v432 = vpop.f32.mrb[0].mxu0
    %v433 = vadd.f32 %v127, %v432
    %v434 = vpop.f32.mrb[0].mxu0
    %v435 = vpop.f32.mrb[0].mxu0
    %v436 = vadd.f32 %v127, %v435
    %v437 = vpop.f32.mrb[0].mxu0
    %438 = vmatprep.mubr.bf16.mxu0 0
    %439 = vmatmul.mubr.bf16.gmra.mrb[0].mxu0 %v206
    %v440 = vpop.f32.mrb[0].mxu0
    %v441 = vadd.f32 %v127, %v440
    %v442 = vpop.f32.mrb[0].mxu0
    %v443 = vpop.f32.mrb[0].mxu0
    %v444 = vadd.f32 %v127, %v443
    %v445 = vpop.f32.mrb[0].mxu0
    %446 = vmatprep.mubr.bf16.mxu0 0
    %447 = vmatmul.mubr.bf16.gmra.mrb[0].mxu0 %v209
    %v448 = vpop.f32.mrb[0].mxu0
    %v449 = vadd.f32 %v127, %v448
    %v450 = vpop.f32.mrb[0].mxu0
    %v451 = vpop.f32.mrb[0].mxu0
    %v452 = vadd.f32 %v127, %v451
    %v453 = vpop.f32.mrb[0].mxu0
    %454 = vmatprep.mubr.bf16.mxu0 0
    %455 = vmatmul.mubr.bf16.gmra.mrb[0].mxu0 %v212
    %v456 = vpop.f32.mrb[0].mxu0
    %v457 = vadd.f32 %v127, %v456
    %v458 = vpop.f32.mrb[0].mxu0
    %v459 = vpop.f32.mrb[0].mxu0
    %v460 = vadd.f32 %v127, %v459
    %v461 = vpop.f32.mrb[0].mxu0
    %462 = vmatprep.mubr.bf16.mxu0 0
    %463 = vmatmul.mubr.bf16.gmra.mrb[0].mxu0 %v215
    %v464 = vpop.f32.mrb[0].mxu0
    %v465 = vadd.f32 %v127, %v464
    %v466 = vpop.f32.mrb[0].mxu0
    %v467 = vpop.f32.mrb[0].mxu0
    %v468 = vadd.f32 %v127, %v467
    %v469 = vpop.f32.mrb[0].mxu0
    %470 = vmatprep.mubr.bf16.mxu0 0
    %471 = vmatmul.mubr.bf16.gmra.mrb[0].mxu0 %v218
    %v472 = vpop.f32.mrb[0].mxu0
    %v473 = vadd.f32 %v127, %v472
    %v474 = vpop.f32.mrb[0].mxu0
    %v475 = vpop.f32.mrb[0].mxu0
    %v476 = vadd.f32 %v127, %v475
    %v477 = vpop.f32.mrb[0].mxu0
    %478 = vmatprep.mubr.bf16.mxu0 0
    %479 = vmatmul.mubr.bf16.gmra.mrb[0].mxu0 %v221
    %v480 = vpop.f32.mrb[0].mxu0
    %v481 = vadd.f32 %v127, %v480
    %v482 = vpop.f32.mrb[0].mxu0
    %v483 = vpop.f32.mrb[0].mxu0
    %v484 = vadd.f32 %v127, %v483
    %v485 = vpop.f32.mrb[0].mxu0
    %486 = vmatprep.mubr.bf16.mxu0 0
    %487 = vmatmul.mubr.bf16.gmra.mrb[0].mxu0 %v224
    %v488 = vpop.f32.mrb[0].mxu0
    %v489 = vadd.f32 %v127, %v488
    %v490 = vpop.f32.mrb[0].mxu0
    %v491 = vpop.f32.mrb[0].mxu0
    %v492 = vadd.f32 %v127, %v491
    %v493 = vpop.f32.mrb[0].mxu0
    %494 = vmatprep.mubr.bf16.mxu0 0
    %495 = vmatmul.mubr.bf16.gmra.mrb[0].mxu0 %v227
    %v496 = vpop.f32.mrb[0].mxu0
    %v497 = vadd.f32 %v127, %v496
    %v498 = vpop.f32.mrb[0].mxu0
    %v499 = vpop.f32.mrb[0].mxu0
    %v500 = vadd.f32 %v127, %v499
    %v501 = vpop.f32.mrb[0].mxu0
    %502 = vmatprep.mubr.bf16.mxu0 0
    %503 = vmatmul.mubr.bf16.gmra.mrb[0].mxu0 %v230
    %v504 = vpop.f32.mrb[0].mxu0
    %v505 = vadd.f32 %v127, %v504
    %v506 = vpop.f32.mrb[0].mxu0
    %v507 = vpop.f32.mrb[0].mxu0
    %v508 = vadd.f32 %v127, %v507
    %v509 = vpop.f32.mrb[0].mxu0
    %510 = vmatprep.mubr.bf16.mxu0 0
    %511 = vmatmul.mubr.bf16.gmra.mrb[0].mxu0 %v233
    %v512 = vpop.f32.mrb[0].mxu0
    %v513 = vadd.f32 %v127, %v512
    %v514 = vpop.f32.mrb[0].mxu0
    %v515 = vpop.f32.mrb[0].mxu0
    %v516 = vadd.f32 %v127, %v515
    %v517 = vpop.f32.mrb[0].mxu0
    %518 = vmatprep.mubr.bf16.mxu0 0
    %519 = vmatmul.mubr.bf16.gmra.mrb[0].mxu0 %v236
    %v520 = vpop.f32.mrb[0].mxu0
    %v521 = vadd.f32 %v127, %v520
    %v522 = vpop.f32.mrb[0].mxu0
    %v523 = vpop.f32.mrb[0].mxu0
    %v524 = vadd.f32 %v127, %v523
    %v525 = vpop.f32.mrb[0].mxu0
    %526 = vdwg.mxu0
    %v527 = vmax.f32 %v273, 0.0
    %v528 = vmax.f32 %v276, 0.0
    %v529 = vmax.f32 %v281, 0.0
    %v530 = vmax.f32 %v284, 0.0
    %v531 = vmax.f32 %v289, 0.0
    %v532 = vmax.f32 %v292, 0.0
    %v533 = vmax.f32 %v297, 0.0
    %v534 = vmax.f32 %v300, 0.0
    %v535 = vmax.f32 %v305, 0.0
    %v536 = vmax.f32 %v308, 0.0
    %v537 = vmax.f32 %v313, 0.0
    %v538 = vmax.f32 %v316, 0.0
    %v539 = vmax.f32 %v321, 0.0
    %v540 = vmax.f32 %v324, 0.0
    %v541 = vmax.f32 %v329, 0.0
    %v542 = vmax.f32 %v332, 0.0
    %v543 = vmax.f32 %v337, 0.0
    %v544 = vmax.f32 %v340, 0.0
    %v545 = vmax.f32 %v345, 0.0
    %v546 = vmax.f32 %v348, 0.0
    %v547 = vmax.f32 %v353, 0.0
    %v548 = vmax.f32 %v356, 0.0
    %v549 = vmax.f32 %v361, 0.0
    %v550 = vmax.f32 %v364, 0.0
    %v551 = vmax.f32 %v369, 0.0
    %v552 = vmax.f32 %v372, 0.0
    %v553 = vmax.f32 %v377, 0.0
    %v554 = vmax.f32 %v380, 0.0
    %v555 = vmax.f32 %v385, 0.0
    %v556 = vmax.f32 %v388, 0.0
    %v557 = vmax.f32 %v393, 0.0
    %v558 = vmax.f32 %v396, 0.0
    %v559 = vmax.f32 %v401, 0.0
    %v560 = vmax.f32 %v404, 0.0
    %v561 = vmax.f32 %v409, 0.0
    %v562 = vmax.f32 %v412, 0.0
    %v563 = vmax.f32 %v417, 0.0
    %v564 = vmax.f32 %v420, 0.0
    %v565 = vmax.f32 %v425, 0.0
    %v566 = vmax.f32 %v428, 0.0
    %v567 = vmax.f32 %v433, 0.0
    %v568 = vmax.f32 %v436, 0.0
    %v569 = vmax.f32 %v441, 0.0
    %v570 = vmax.f32 %v444, 0.0
    %v571 = vmax.f32 %v449, 0.0
    %v572 = vmax.f32 %v452, 0.0
    %v573 = vmax.f32 %v457, 0.0
    %v574 = vmax.f32 %v460, 0.0
    %v575 = vmax.f32 %v465, 0.0
    %v576 = vmax.f32 %v468, 0.0
    %v577 = vmax.f32 %v473, 0.0
    %v578 = vmax.f32 %v476, 0.0
    %v579 = vmax.f32 %v481, 0.0
    %v580 = vmax.f32 %v484, 0.0
    %v581 = vmax.f32 %v489, 0.0
    %v582 = vmax.f32 %v492, 0.0
    %v583 = vmax.f32 %v497, 0.0
    %v584 = vmax.f32 %v500, 0.0
    %v585 = vmax.f32 %v505, 0.0
    %v586 = vmax.f32 %v508, 0.0
    %v587 = vmax.f32 %v513, 0.0
    %v588 = vmax.f32 %v516, 0.0
    %v589 = vmax.f32 %v521, 0.0
    %v590 = vmax.f32 %v524, 0.0
    %v591 = vpack.c.bf16 %v528, %v527
    %v592 = vpack.c.bf16 %v530, %v529
    %v593 = vpack.c.bf16 %v532, %v531
    %v594 = vpack.c.bf16 %v534, %v533
    %v595 = vpack.c.bf16 %v536, %v535
    %v596 = vpack.c.bf16 %v538, %v537
    %v597 = vpack.c.bf16 %v540, %v539
    %v598 = vpack.c.bf16 %v542, %v541
    %v599 = vpack.c.bf16 %v544, %v543
    %v600 = vpack.c.bf16 %v546, %v545
    %v601 = vpack.c.bf16 %v548, %v547
    %v602 = vpack.c.bf16 %v550, %v549
    %v603 = vpack.c.bf16 %v552, %v551
    %v604 = vpack.c.bf16 %v554, %v553
    %v605 = vpack.c.bf16 %v556, %v555
    %v606 = vpack.c.bf16 %v558, %v557
    %v607 = vpack.c.bf16 %v560, %v559
    %v608 = vpack.c.bf16 %v562, %v561
    %v609 = vpack.c.bf16 %v564, %v563
    %v610 = vpack.c.bf16 %v566, %v565
    %v611 = vpack.c.bf16 %v568, %v567
    %v612 = vpack.c.bf16 %v570, %v569
    %v613 = vpack.c.bf16 %v572, %v571
    %v614 = vpack.c.bf16 %v574, %v573
    %v615 = vpack.c.bf16 %v576, %v575
    %v616 = vpack.c.bf16 %v578, %v577
    %v617 = vpack.c.bf16 %v580, %v579
    %v618 = vpack.c.bf16 %v582, %v581
    %v619 = vpack.c.bf16 %v584, %v583
    %v620 = vpack.c.bf16 %v586, %v585
    %v621 = vpack.c.bf16 %v588, %v587
    %v622 = vpack.c.bf16 %v590, %v589
    %v623 = vld [vmem:[%s3] sm:$0xf]
    %v624 = vld [vmem:[%s3 + $0x4] sm:$0xf]
    %v625 = vld [vmem:[%s3 + $0x8] sm:$0xf]
    %v626 = vld [vmem:[%s3 + $0xc] sm:$0xf]
    %v627 = vld [vmem:[%s3 + $0x10] sm:$0xf]
    %v628 = vld [vmem:[%s3 + $0x14] sm:$0xf]
    %v629 = vld [vmem:[%s3 + $0x18] sm:$0xf]
    %v630 = vld [vmem:[%s3 + $0x1c] sm:$0xf]
    %v631 = vld [vmem:[%s3 + $0x20] sm:$0xf]
    %v632 = vld [vmem:[%s3 + $0x24] sm:$0xf]
    %v633 = vld [vmem:[%s3 + $0x28] sm:$0xf]
    %v634 = vld [vmem:[%s3 + $0x2c] sm:$0xf]
    %v635 = vld [vmem:[%s3 + $0x30] sm:$0xf]
    %v636 = vld [vmem:[%s3 + $0x34] sm:$0xf]
    %v637 = vld [vmem:[%s3 + $0x38] sm:$0xf]
    %v638 = vld [vmem:[%s3 + $0x3c] sm:$0xf]
    %v639 = vld [vmem:[%s4] sm:$0x1]
    %v641 = vlaneseq
    %v642 = vshrl.u32 %v641, 7
    %v643 = vsub.s32 0, %v642
    %v644 = vrot.slane %v639, %v643
    %v662 = vunpack.c.l.b16 %v623
    %v663 = vunpack.c.l.b16 %v624
    %v664 = vunpack.c.l.b16 %v625
    %v665 = vunpack.c.l.b16 %v626
    %v666 = vunpack.c.l.b16 %v627
    %v667 = vunpack.c.l.b16 %v628
    %v668 = vunpack.c.l.b16 %v629
    %v669 = vunpack.c.l.b16 %v630
    %v670 = vunpack.c.l.b16 %v631
    %v671 = vunpack.c.l.b16 %v632
    %v672 = vunpack.c.l.b16 %v633
    %v673 = vunpack.c.l.b16 %v634
    %v674 = vunpack.c.l.b16 %v635
    %v675 = vunpack.c.l.b16 %v636
    %v676 = vunpack.c.l.b16 %v637
    %v677 = vunpack.c.l.b16 %v638
    %v678 = vpack.c.b16 %v663, %v662
    %v679 = vpack.c.b16 %v665, %v664
    %v680 = vpack.c.b16 %v667, %v666
    %v681 = vpack.c.b16 %v669, %v668
    %v682 = vpack.c.b16 %v671, %v670
    %v683 = vpack.c.b16 %v673, %v672
    %v684 = vpack.c.b16 %v675, %v674
    %v685 = vpack.c.b16 %v677, %v676
    %694 = vmatprep.subr.bf16.mxu0 0
    %695 = vmatpush1.bf16.msra.mxu0 %v678
    %696 = vmatprep.subr.bf16.mxu0 0
    %697 = vmatpush1.bf16.msra.mxu0 %v679
    %698 = vmatprep.subr.bf16.mxu0 0
    %699 = vmatpush1.bf16.msra.mxu0 %v680
    %700 = vmatprep.subr.bf16.mxu0 0
    %701 = vmatpush1.bf16.msra.mxu0 %v681
    %702 = vmatprep.subr.bf16.mxu0 0
    %703 = vmatpush1.bf16.msra.mxu0 %v682
    %704 = vmatprep.subr.bf16.mxu0 0
    %705 = vmatpush1.bf16.msra.mxu0 %v683
    %706 = vmatprep.subr.bf16.mxu0 0
    %707 = vmatpush1.bf16.msra.mxu0 %v684
    %708 = vmatprep.subr.bf16.mxu0 0
    %709 = vmatpush1.bf16.msra.mxu0 %v685
    %710 = vmatprep.subr.bf16.mxu0 0
    %711 = vmatpush1.bf16.msra.mxu0 0
    %712 = vmatprep.subr.bf16.mxu0 0
    %713 = vmatpush1.bf16.msra.mxu0 0
    %714 = vmatprep.subr.bf16.mxu0 0
    %715 = vmatpush1.bf16.msra.mxu0 0
    %716 = vmatprep.subr.bf16.mxu0 0
    %717 = vmatpush1.bf16.msra.mxu0 0
    %718 = vmatprep.subr.bf16.mxu0 0
    %719 = vmatpush1.bf16.msra.mxu0 0
    %720 = vmatprep.subr.bf16.mxu0 0
    %721 = vmatpush1.bf16.msra.mxu0 0
    %722 = vmatprep.subr.bf16.mxu0 0
    %723 = vmatpush1.bf16.msra.mxu0 0
    %724 = vmatprep.subr.bf16.mxu0 0
    %725 = vmatpush1.bf16.msra.mxu0 0
    %726 = vmatprep.mubr.bf16.mxu0 0
    %727 = vmatmul.mubr.bf16.gmra.mrb[0].mxu0 %v591
    %v728 = vpop.f32.mrb[0].mxu0
    %v729 = vadd.f32 %v644, %v728
    %v730 = vpop.f32.mrb[0].mxu0
    %v731 = vpop.f32.mrb[0].mxu0
    %v732 = vadd.f32 %v644, %v731
    %v733 = vpop.f32.mrb[0].mxu0
    %734 = vmatprep.mubr.bf16.mxu0 0
    %735 = vmatmul.mubr.bf16.gmra.mrb[0].mxu0 %v592
    %v736 = vpop.f32.mrb[0].mxu0
    %v737 = vadd.f32 %v644, %v736
    %v738 = vpop.f32.mrb[0].mxu0
    %v739 = vpop.f32.mrb[0].mxu0
    %v740 = vadd.f32 %v644, %v739
    %v741 = vpop.f32.mrb[0].mxu0
    %742 = vmatprep.mubr.bf16.mxu0 0
    %743 = vmatmul.mubr.bf16.gmra.mrb[0].mxu0 %v593
    %v744 = vpop.f32.mrb[0].mxu0
    %v745 = vadd.f32 %v644, %v744
    %v746 = vpop.f32.mrb[0].mxu0
    %v747 = vpop.f32.mrb[0].mxu0
    %v748 = vadd.f32 %v644, %v747
    %v749 = vpop.f32.mrb[0].mxu0
    %750 = vmatprep.mubr.bf16.mxu0 0
    %751 = vmatmul.mubr.bf16.gmra.mrb[0].mxu0 %v594
    %v752 = vpop.f32.mrb[0].mxu0
    %v753 = vadd.f32 %v644, %v752
    %v754 = vpop.f32.mrb[0].mxu0
    %v755 = vpop.f32.mrb[0].mxu0
    %v756 = vadd.f32 %v644, %v755
    %v757 = vpop.f32.mrb[0].mxu0
    %758 = vmatprep.mubr.bf16.mxu0 0
    %759 = vmatmul.mubr.bf16.gmra.mrb[0].mxu0 %v595
    %v760 = vpop.f32.mrb[0].mxu0
    %v761 = vadd.f32 %v644, %v760
    %v762 = vpop.f32.mrb[0].mxu0
    %v763 = vpop.f32.mrb[0].mxu0
    %v764 = vadd.f32 %v644, %v763
    %v765 = vpop.f32.mrb[0].mxu0
    %766 = vmatprep.mubr.bf16.mxu0 0
    %767 = vmatmul.mubr.bf16.gmra.mrb[0].mxu0 %v596
    %v768 = vpop.f32.mrb[0].mxu0
    %v769 = vadd.f32 %v644, %v768
    %v770 = vpop.f32.mrb[0].mxu0
    %v771 = vpop.f32.mrb[0].mxu0
    %v772 = vadd.f32 %v644, %v771
    %v773 = vpop.f32.mrb[0].mxu0
    %774 = vmatprep.mubr.bf16.mxu0 0
    %775 = vmatmul.mubr.bf16.gmra.mrb[0].mxu0 %v597
    %v776 = vpop.f32.mrb[0].mxu0
    %v777 = vadd.f32 %v644, %v776
    %v778 = vpop.f32.mrb[0].mxu0
    %v779 = vpop.f32.mrb[0].mxu0
    %v780 = vadd.f32 %v644, %v779
    %v781 = vpop.f32.mrb[0].mxu0
    %782 = vmatprep.mubr.bf16.mxu0 0
    %783 = vmatmul.mubr.bf16.gmra.mrb[0].mxu0 %v598
    %v784 = vpop.f32.mrb[0].mxu0
    %v785 = vadd.f32 %v644, %v784
    %v786 = vpop.f32.mrb[0].mxu0
    %v787 = vpop.f32.mrb[0].mxu0
    %v788 = vadd.f32 %v644, %v787
    %v789 = vpop.f32.mrb[0].mxu0
    %790 = vmatprep.mubr.bf16.mxu0 0
    %791 = vmatmul.mubr.bf16.gmra.mrb[0].mxu0 %v599
    %v792 = vpop.f32.mrb[0].mxu0
    %v793 = vadd.f32 %v644, %v792
    %v794 = vpop.f32.mrb[0].mxu0
    %v795 = vpop.f32.mrb[0].mxu0
    %v796 = vadd.f32 %v644, %v795
    %v797 = vpop.f32.mrb[0].mxu0
    %798 = vmatprep.mubr.bf16.mxu0 0
    %799 = vmatmul.mubr.bf16.gmra.mrb[0].mxu0 %v600
    %v800 = vpop.f32.mrb[0].mxu0
    %v801 = vadd.f32 %v644, %v800
    %v802 = vpop.f32.mrb[0].mxu0
    %v803 = vpop.f32.mrb[0].mxu0
    %v804 = vadd.f32 %v644, %v803
    %v805 = vpop.f32.mrb[0].mxu0
    %806 = vmatprep.mubr.bf16.mxu0 0
    %807 = vmatmul.mubr.bf16.gmra.mrb[0].mxu0 %v601
    %v808 = vpop.f32.mrb[0].mxu0
    %v809 = vadd.f32 %v644, %v808
    %v810 = vpop.f32.mrb[0].mxu0
    %v811 = vpop.f32.mrb[0].mxu0
    %v812 = vadd.f32 %v644, %v811
    %v813 = vpop.f32.mrb[0].mxu0
    %814 = vmatprep.mubr.bf16.mxu0 0
    %815 = vmatmul.mubr.bf16.gmra.mrb[0].mxu0 %v602
    %v816 = vpop.f32.mrb[0].mxu0
    %v817 = vadd.f32 %v644, %v816
    %v818 = vpop.f32.mrb[0].mxu0
    %v819 = vpop.f32.mrb[0].mxu0
    %v820 = vadd.f32 %v644, %v819
    %v821 = vpop.f32.mrb[0].mxu0
    %822 = vmatprep.mubr.bf16.mxu0 0
    %823 = vmatmul.mubr.bf16.gmra.mrb[0].mxu0 %v603
    %v824 = vpop.f32.mrb[0].mxu0
    %v825 = vadd.f32 %v644, %v824
    %v826 = vpop.f32.mrb[0].mxu0
    %v827 = vpop.f32.mrb[0].mxu0
    %v828 = vadd.f32 %v644, %v827
    %v829 = vpop.f32.mrb[0].mxu0
    %830 = vmatprep.mubr.bf16.mxu0 0
    %831 = vmatmul.mubr.bf16.gmra.mrb[0].mxu0 %v604
    %v832 = vpop.f32.mrb[0].mxu0
    %v833 = vadd.f32 %v644, %v832
    %v834 = vpop.f32.mrb[0].mxu0
    %v835 = vpop.f32.mrb[0].mxu0
    %v836 = vadd.f32 %v644, %v835
    %v837 = vpop.f32.mrb[0].mxu0
    %838 = vmatprep.mubr.bf16.mxu0 0
    %839 = vmatmul.mubr.bf16.gmra.mrb[0].mxu0 %v605
    %v840 = vpop.f32.mrb[0].mxu0
    %v841 = vadd.f32 %v644, %v840
    %v842 = vpop.f32.mrb[0].mxu0
    %v843 = vpop.f32.mrb[0].mxu0
    %v844 = vadd.f32 %v644, %v843
    %v845 = vpop.f32.mrb[0].mxu0
    %846 = vmatprep.mubr.bf16.mxu0 0
    %847 = vmatmul.mubr.bf16.gmra.mrb[0].mxu0 %v606
    %v848 = vpop.f32.mrb[0].mxu0
    %v849 = vadd.f32 %v644, %v848
    %v850 = vpop.f32.mrb[0].mxu0
    %v851 = vpop.f32.mrb[0].mxu0
    %v852 = vadd.f32 %v644, %v851
    %v853 = vpop.f32.mrb[0].mxu0
    %854 = vmatprep.mubr.bf16.mxu0 0
    %855 = vmatmul.mubr.bf16.gmra.mrb[0].mxu0 %v607
    %v856 = vpop.f32.mrb[0].mxu0
    %v857 = vadd.f32 %v644, %v856
    %v858 = vpop.f32.mrb[0].mxu0
    %v859 = vpop.f32.mrb[0].mxu0
    %v860 = vadd.f32 %v644, %v859
    %v861 = vpop.f32.mrb[0].mxu0
    %862 = vmatprep.mubr.bf16.mxu0 0
    %863 = vmatmul.mubr.bf16.gmra.mrb[0].mxu0 %v608
    %v864 = vpop.f32.mrb[0].mxu0
    %v865 = vadd.f32 %v644, %v864
    %v866 = vpop.f32.mrb[0].mxu0
    %v867 = vpop.f32.mrb[0].mxu0
    %v868 = vadd.f32 %v644, %v867
    %v869 = vpop.f32.mrb[0].mxu0
    %870 = vmatprep.mubr.bf16.mxu0 0
    %871 = vmatmul.mubr.bf16.gmra.mrb[0].mxu0 %v609
    %v872 = vpop.f32.mrb[0].mxu0
    %v873 = vadd.f32 %v644, %v872
    %v874 = vpop.f32.mrb[0].mxu0
    %v875 = vpop.f32.mrb[0].mxu0
    %v876 = vadd.f32 %v644, %v875
    %v877 = vpop.f32.mrb[0].mxu0
    %878 = vmatprep.mubr.bf16.mxu0 0
    %879 = vmatmul.mubr.bf16.gmra.mrb[0].mxu0 %v610
    %v880 = vpop.f32.mrb[0].mxu0
    %v881 = vadd.f32 %v644, %v880
    %v882 = vpop.f32.mrb[0].mxu0
    %v883 = vpop.f32.mrb[0].mxu0
    %v884 = vadd.f32 %v644, %v883
    %v885 = vpop.f32.mrb[0].mxu0
    %886 = vmatprep.mubr.bf16.mxu0 0
    %887 = vmatmul.mubr.bf16.gmra.mrb[0].mxu0 %v611
    %v888 = vpop.f32.mrb[0].mxu0
    %v889 = vadd.f32 %v644, %v888
    %v890 = vpop.f32.mrb[0].mxu0
    %v891 = vpop.f32.mrb[0].mxu0
    %v892 = vadd.f32 %v644, %v891
    %v893 = vpop.f32.mrb[0].mxu0
    %894 = vmatprep.mubr.bf16.mxu0 0
    %895 = vmatmul.mubr.bf16.gmra.mrb[0].mxu0 %v612
    %v896 = vpop.f32.mrb[0].mxu0
    %v897 = vadd.f32 %v644, %v896
    %v898 = vpop.f32.mrb[0].mxu0
    %v899 = vpop.f32.mrb[0].mxu0
    %v900 = vadd.f32 %v644, %v899
    %v901 = vpop.f32.mrb[0].mxu0
    %902 = vmatprep.mubr.bf16.mxu0 0
    %903 = vmatmul.mubr.bf16.gmra.mrb[0].mxu0 %v613
    %v904 = vpop.f32.mrb[0].mxu0
    %v905 = vadd.f32 %v644, %v904
    %v906 = vpop.f32.mrb[0].mxu0
    %v907 = vpop.f32.mrb[0].mxu0
    %v908 = vadd.f32 %v644, %v907
    %v909 = vpop.f32.mrb[0].mxu0
    %910 = vmatprep.mubr.bf16.mxu0 0
    %911 = vmatmul.mubr.bf16.gmra.mrb[0].mxu0 %v614
    %v912 = vpop.f32.mrb[0].mxu0
    %v913 = vadd.f32 %v644, %v912
    %v914 = vpop.f32.mrb[0].mxu0
    %v915 = vpop.f32.mrb[0].mxu0
    %v916 = vadd.f32 %v644, %v915
    %v917 = vpop.f32.mrb[0].mxu0
    %918 = vmatprep.mubr.bf16.mxu0 0
    %919 = vmatmul.mubr.bf16.gmra.mrb[0].mxu0 %v615
    %v920 = vpop.f32.mrb[0].mxu0
    %v921 = vadd.f32 %v644, %v920
    %v922 = vpop.f32.mrb[0].mxu0
    %v923 = vpop.f32.mrb[0].mxu0
    %v924 = vadd.f32 %v644, %v923
    %v925 = vpop.f32.mrb[0].mxu0
    %926 = vmatprep.mubr.bf16.mxu0 0
    %927 = vmatmul.mubr.bf16.gmra.mrb[0].mxu0 %v616
    %v928 = vpop.f32.mrb[0].mxu0
    %v929 = vadd.f32 %v644, %v928
    %v930 = vpop.f32.mrb[0].mxu0
    %v931 = vpop.f32.mrb[0].mxu0
    %v932 = vadd.f32 %v644, %v931
    %v933 = vpop.f32.mrb[0].mxu0
    %934 = vmatprep.mubr.bf16.mxu0 0
    %935 = vmatmul.mubr.bf16.gmra.mrb[0].mxu0 %v617
    %v936 = vpop.f32.mrb[0].mxu0
    %v937 = vadd.f32 %v644, %v936
    %v938 = vpop.f32.mrb[0].mxu0
    %v939 = vpop.f32.mrb[0].mxu0
    %v940 = vadd.f32 %v644, %v939
    %v941 = vpop.f32.mrb[0].mxu0
    %942 = vmatprep.mubr.bf16.mxu0 0
    %943 = vmatmul.mubr.bf16.gmra.mrb[0].mxu0 %v618
    %v944 = vpop.f32.mrb[0].mxu0
    %v945 = vadd.f32 %v644, %v944
    %v946 = vpop.f32.mrb[0].mxu0
    %v947 = vpop.f32.mrb[0].mxu0
    %v948 = vadd.f32 %v644, %v947
    %v949 = vpop.f32.mrb[0].mxu0
    %950 = vmatprep.mubr.bf16.mxu0 0
    %951 = vmatmul.mubr.bf16.gmra.mrb[0].mxu0 %v619
    %v952 = vpop.f32.mrb[0].mxu0
    %v953 = vadd.f32 %v644, %v952
    %v954 = vpop.f32.mrb[0].mxu0
    %v955 = vpop.f32.mrb[0].mxu0
    %v956 = vadd.f32 %v644, %v955
    %v957 = vpop.f32.mrb[0].mxu0
    %958 = vmatprep.mubr.bf16.mxu0 0
    %959 = vmatmul.mubr.bf16.gmra.mrb[0].mxu0 %v620
    %v960 = vpop.f32.mrb[0].mxu0
    %v961 = vadd.f32 %v644, %v960
    %v962 = vpop.f32.mrb[0].mxu0
    %v963 = vpop.f32.mrb[0].mxu0
    %v964 = vadd.f32 %v644, %v963
    %v965 = vpop.f32.mrb[0].mxu0
    %966 = vmatprep.mubr.bf16.mxu0 0
    %967 = vmatmul.mubr.bf16.gmra.mrb[0].mxu0 %v621
    %v968 = vpop.f32.mrb[0].mxu0
    %v969 = vadd.f32 %v644, %v968
    %v970 = vpop.f32.mrb[0].mxu0
    %v971 = vpop.f32.mrb[0].mxu0
    %v972 = vadd.f32 %v644, %v971
    %v973 = vpop.f32.mrb[0].mxu0
    %974 = vmatprep.mubr.bf16.mxu0 0
    %975 = vmatmul.mubr.bf16.gmra.mrb[0].mxu0 %v622
    %v976 = vpop.f32.mrb[0].mxu0
    %v977 = vadd.f32 %v644, %v976
    %v978 = vpop.f32.mrb[0].mxu0
    %v979 = vpop.f32.mrb[0].mxu0
    %v980 = vadd.f32 %v644, %v979
    %v981 = vpop.f32.mrb[0].mxu0
    %982 = vdwg.mxu0
    %v983 = vpack.c.bf16 %v732, %v729
    %v984 = vpack.c.bf16 %v740, %v737
    %v985 = vpack.c.bf16 %v748, %v745
    %v986 = vpack.c.bf16 %v756, %v753
    %v987 = vpack.c.bf16 %v764, %v761
    %v988 = vpack.c.bf16 %v772, %v769
    %v989 = vpack.c.bf16 %v780, %v777
    %v990 = vpack.c.bf16 %v788, %v785
    %v991 = vpack.c.bf16 %v796, %v793
    %v992 = vpack.c.bf16 %v804, %v801
    %v993 = vpack.c.bf16 %v812, %v809
    %v994 = vpack.c.bf16 %v820, %v817
    %v995 = vpack.c.bf16 %v828, %v825
    %v996 = vpack.c.bf16 %v836, %v833
    %v997 = vpack.c.bf16 %v844, %v841
    %v998 = vpack.c.bf16 %v852, %v849
    %v999 = vpack.c.bf16 %v860, %v857
    %v1000 = vpack.c.bf16 %v868, %v865
    %v1001 = vpack.c.bf16 %v876, %v873
    %v1002 = vpack.c.bf16 %v884, %v881
    %v1003 = vpack.c.bf16 %v892, %v889
    %v1004 = vpack.c.bf16 %v900, %v897
    %v1005 = vpack.c.bf16 %v908, %v905
    %v1006 = vpack.c.bf16 %v916, %v913
    %v1007 = vpack.c.bf16 %v924, %v921
    %v1008 = vpack.c.bf16 %v932, %v929
    %v1009 = vpack.c.bf16 %v940, %v937
    %v1010 = vpack.c.bf16 %v948, %v945
    %v1011 = vpack.c.bf16 %v956, %v953
    %v1012 = vpack.c.bf16 %v964, %v961
    %v1013 = vpack.c.bf16 %v972, %v969
    %v1014 = vpack.c.bf16 %v980, %v977
    %v1047 = vunpack.c.l.b16 %v983
    %v1048 = vunpack.c.h.b16 %v983
    %v1049 = vunpack.c.l.b16 %v984
    %v1050 = vunpack.c.h.b16 %v984
    %v1051 = vunpack.c.l.b16 %v985
    %v1052 = vunpack.c.h.b16 %v985
    %v1053 = vunpack.c.l.b16 %v986
    %v1054 = vunpack.c.h.b16 %v986
    %v1055 = vunpack.c.l.b16 %v987
    %v1056 = vunpack.c.h.b16 %v987
    %v1057 = vunpack.c.l.b16 %v988
    %v1058 = vunpack.c.h.b16 %v988
    %v1059 = vunpack.c.l.b16 %v989
    %v1060 = vunpack.c.h.b16 %v989
    %v1061 = vunpack.c.l.b16 %v990
    %v1062 = vunpack.c.h.b16 %v990
    %v1063 = vunpack.c.l.b16 %v991
    %v1064 = vunpack.c.h.b16 %v991
    %v1065 = vunpack.c.l.b16 %v992
    %v1066 = vunpack.c.h.b16 %v992
    %v1067 = vunpack.c.l.b16 %v993
    %v1068 = vunpack.c.h.b16 %v993
    %v1069 = vunpack.c.l.b16 %v994
    %v1070 = vunpack.c.h.b16 %v994
    %v1071 = vunpack.c.l.b16 %v995
    %v1072 = vunpack.c.h.b16 %v995
    %v1073 = vunpack.c.l.b16 %v996
    %v1074 = vunpack.c.h.b16 %v996
    %v1075 = vunpack.c.l.b16 %v997
    %v1076 = vunpack.c.h.b16 %v997
    %v1077 = vunpack.c.l.b16 %v998
    %v1078 = vunpack.c.h.b16 %v998
    %v1079 = vunpack.c.l.b16 %v999
    %v1080 = vunpack.c.h.b16 %v999
    %v1081 = vunpack.c.l.b16 %v1000
    %v1082 = vunpack.c.h.b16 %v1000
    %v1083 = vunpack.c.l.b16 %v1001
    %v1084 = vunpack.c.h.b16 %v1001
    %v1085 = vunpack.c.l.b16 %v1002
    %v1086 = vunpack.c.h.b16 %v1002
    %v1087 = vunpack.c.l.b16 %v1003
    %v1088 = vunpack.c.h.b16 %v1003
    %v1089 = vunpack.c.l.b16 %v1004
    %v1090 = vunpack.c.h.b16 %v1004
    %v1091 = vunpack.c.l.b16 %v1005
    %v1092 = vunpack.c.h.b16 %v1005
    %v1093 = vunpack.c.l.b16 %v1006
    %v1094 = vunpack.c.h.b16 %v1006
    %v1095 = vunpack.c.l.b16 %v1007
    %v1096 = vunpack.c.h.b16 %v1007
    %v1097 = vunpack.c.l.b16 %v1008
    %v1098 = vunpack.c.h.b16 %v1008
    %v1099 = vunpack.c.l.b16 %v1009
    %v1100 = vunpack.c.h.b16 %v1009
    %v1101 = vunpack.c.l.b16 %v1010
    %v1102 = vunpack.c.h.b16 %v1010
    %v1103 = vunpack.c.l.b16 %v1011
    %v1104 = vunpack.c.h.b16 %v1011
    %v1105 = vunpack.c.l.b16 %v1012
    %v1106 = vunpack.c.h.b16 %v1012
    %v1107 = vunpack.c.l.b16 %v1013
    %v1108 = vunpack.c.h.b16 %v1013
    %v1109 = vunpack.c.l.b16 %v1014
    %v1110 = vunpack.c.h.b16 %v1014
    %v1111 = vpack.c.b16 %v1047, %v1047
    %v1112 = vpack.c.b16 %v1048, %v1048
    %v1113 = vpack.c.b16 %v1049, %v1049
    %v1114 = vpack.c.b16 %v1050, %v1050
    %v1115 = vpack.c.b16 %v1051, %v1051
    %v1116 = vpack.c.b16 %v1052, %v1052
    %v1117 = vpack.c.b16 %v1053, %v1053
    %v1118 = vpack.c.b16 %v1054, %v1054
    %v1119 = vpack.c.b16 %v1055, %v1055
    %v1120 = vpack.c.b16 %v1056, %v1056
    %v1121 = vpack.c.b16 %v1057, %v1057
    %v1122 = vpack.c.b16 %v1058, %v1058
    %v1123 = vpack.c.b16 %v1059, %v1059
    %v1124 = vpack.c.b16 %v1060, %v1060
    %v1125 = vpack.c.b16 %v1061, %v1061
    %v1126 = vpack.c.b16 %v1062, %v1062
    %v1127 = vpack.c.b16 %v1063, %v1063
    %v1128 = vpack.c.b16 %v1064, %v1064
    %v1129 = vpack.c.b16 %v1065, %v1065
    %v1130 = vpack.c.b16 %v1066, %v1066
    %v1131 = vpack.c.b16 %v1067, %v1067
    %v1132 = vpack.c.b16 %v1068, %v1068
    %v1133 = vpack.c.b16 %v1069, %v1069
    %v1134 = vpack.c.b16 %v1070, %v1070
    %v1135 = vpack.c.b16 %v1071, %v1071
    %v1136 = vpack.c.b16 %v1072, %v1072
    %v1137 = vpack.c.b16 %v1073, %v1073
    %v1138 = vpack.c.b16 %v1074, %v1074
    %v1139 = vpack.c.b16 %v1075, %v1075
    %v1140 = vpack.c.b16 %v1076, %v1076
    %v1141 = vpack.c.b16 %v1077, %v1077
    %v1142 = vpack.c.b16 %v1078, %v1078
    %v1143 = vpack.c.b16 %v1079, %v1079
    %v1144 = vpack.c.b16 %v1080, %v1080
    %v1145 = vpack.c.b16 %v1081, %v1081
    %v1146 = vpack.c.b16 %v1082, %v1082
    %v1147 = vpack.c.b16 %v1083, %v1083
    %v1148 = vpack.c.b16 %v1084, %v1084
    %v1149 = vpack.c.b16 %v1085, %v1085
    %v1150 = vpack.c.b16 %v1086, %v1086
    %v1151 = vpack.c.b16 %v1087, %v1087
    %v1152 = vpack.c.b16 %v1088, %v1088
    %v1153 = vpack.c.b16 %v1089, %v1089
    %v1154 = vpack.c.b16 %v1090, %v1090
    %v1155 = vpack.c.b16 %v1091, %v1091
    %v1156 = vpack.c.b16 %v1092, %v1092
    %v1157 = vpack.c.b16 %v1093, %v1093
    %v1158 = vpack.c.b16 %v1094, %v1094
    %v1159 = vpack.c.b16 %v1095, %v1095
    %v1160 = vpack.c.b16 %v1096, %v1096
    %v1161 = vpack.c.b16 %v1097, %v1097
    %v1162 = vpack.c.b16 %v1098, %v1098
    %v1163 = vpack.c.b16 %v1099, %v1099
    %v1164 = vpack.c.b16 %v1100, %v1100
    %v1165 = vpack.c.b16 %v1101, %v1101
    %v1166 = vpack.c.b16 %v1102, %v1102
    %v1167 = vpack.c.b16 %v1103, %v1103
    %v1168 = vpack.c.b16 %v1104, %v1104
    %v1169 = vpack.c.b16 %v1105, %v1105
    %v1170 = vpack.c.b16 %v1106, %v1106
    %v1171 = vpack.c.b16 %v1107, %v1107
    %v1172 = vpack.c.b16 %v1108, %v1108
    %v1173 = vpack.c.b16 %v1109, %v1109
    %v1174 = vpack.c.b16 %v1110, %v1110
    %1239 = vst [vmem:[#allocation2] sm:$0xf] %v1111
    %1240 = vst [vmem:[#allocation2 + $0x4] sm:$0xf] %v1112
    %1241 = vst [vmem:[#allocation2 + $0x8] sm:$0xf] %v1113
    %1242 = vst [vmem:[#allocation2 + $0xc] sm:$0xf] %v1114
    %1243 = vst [vmem:[#allocation2 + $0x10] sm:$0xf] %v1115
    %1244 = vst [vmem:[#allocation2 + $0x14] sm:$0xf] %v1116
    %1245 = vst [vmem:[#allocation2 + $0x18] sm:$0xf] %v1117
    %1246 = vst [vmem:[#allocation2 + $0x1c] sm:$0xf] %v1118
    %1247 = vst [vmem:[#allocation2 + $0x20] sm:$0xf] %v1119
    %1248 = vst [vmem:[#allocation2 + $0x24] sm:$0xf] %v1120
    %1249 = vst [vmem:[#allocation2 + $0x28] sm:$0xf] %v1121
    %1250 = vst [vmem:[#allocation2 + $0x2c] sm:$0xf] %v1122
    %1251 = vst [vmem:[#allocation2 + $0x30] sm:$0xf] %v1123
    %1252 = vst [vmem:[#allocation2 + $0x34] sm:$0xf] %v1124
    %1253 = vst [vmem:[#allocation2 + $0x38] sm:$0xf] %v1125
    %1254 = vst [vmem:[#allocation2 + $0x3c] sm:$0xf] %v1126
    %1255 = vst [vmem:[#allocation2 + $0x40] sm:$0xf] %v1127
    %1256 = vst [vmem:[#allocation2 + $0x44] sm:$0xf] %v1128
    %1257 = vst [vmem:[#allocation2 + $0x48] sm:$0xf] %v1129
    %1258 = vst [vmem:[#allocation2 + $0x4c] sm:$0xf] %v1130
    %1259 = vst [vmem:[#allocation2 + $0x50] sm:$0xf] %v1131
    %1260 = vst [vmem:[#allocation2 + $0x54] sm:$0xf] %v1132
    %1261 = vst [vmem:[#allocation2 + $0x58] sm:$0xf] %v1133
    %1262 = vst [vmem:[#allocation2 + $0x5c] sm:$0xf] %v1134
    %1263 = vst [vmem:[#allocation2 + $0x60] sm:$0xf] %v1135
    %1264 = vst [vmem:[#allocation2 + $0x64] sm:$0xf] %v1136
    %1265 = vst [vmem:[#allocation2 + $0x68] sm:$0xf] %v1137
    %1266 = vst [vmem:[#allocation2 + $0x6c] sm:$0xf] %v1138
    %1267 = vst [vmem:[#allocation2 + $0x70] sm:$0xf] %v1139
    %1268 = vst [vmem:[#allocation2 + $0x74] sm:$0xf] %v1140
    %1269 = vst [vmem:[#allocation2 + $0x78] sm:$0xf] %v1141
    %1270 = vst [vmem:[#allocation2 + $0x7c] sm:$0xf] %v1142
    %1271 = vst [vmem:[#allocation2 + $0x80] sm:$0xf] %v1143
    %1272 = vst [vmem:[#allocation2 + $0x84] sm:$0xf] %v1144
    %1273 = vst [vmem:[#allocation2 + $0x88] sm:$0xf] %v1145
    %1274 = vst [vmem:[#allocation2 + $0x8c] sm:$0xf] %v1146
    %1275 = vst [vmem:[#allocation2 + $0x90] sm:$0xf] %v1147
    %1276 = vst [vmem:[#allocation2 + $0x94] sm:$0xf] %v1148
    %1277 = vst [vmem:[#allocation2 + $0x98] sm:$0xf] %v1149
    %1278 = vst [vmem:[#allocation2 + $0x9c] sm:$0xf] %v1150
    %1279 = vst [vmem:[#allocation2 + $0xa0] sm:$0xf] %v1151
    %1280 = vst [vmem:[#allocation2 + $0xa4] sm:$0xf] %v1152
    %1281 = vst [vmem:[#allocation2 + $0xa8] sm:$0xf] %v1153
    %1282 = vst [vmem:[#allocation2 + $0xac] sm:$0xf] %v1154
    %1283 = vst [vmem:[#allocation2 + $0xb0] sm:$0xf] %v1155
    %1284 = vst [vmem:[#allocation2 + $0xb4] sm:$0xf] %v1156
    %1285 = vst [vmem:[#allocation2 + $0xb8] sm:$0xf] %v1157
    %1286 = vst [vmem:[#allocation2 + $0xbc] sm:$0xf] %v1158
    %1287 = vst [vmem:[#allocation2 + $0xc0] sm:$0xf] %v1159
    %1288 = vst [vmem:[#allocation2 + $0xc4] sm:$0xf] %v1160
    %1289 = vst [vmem:[#allocation2 + $0xc8] sm:$0xf] %v1161
    %1290 = vst [vmem:[#allocation2 + $0xcc] sm:$0xf] %v1162
    %1291 = vst [vmem:[#allocation2 + $0xd0] sm:$0xf] %v1163
    %1292 = vst [vmem:[#allocation2 + $0xd4] sm:$0xf] %v1164
    %1293 = vst [vmem:[#allocation2 + $0xd8] sm:$0xf] %v1165
    %1294 = vst [vmem:[#allocation2 + $0xdc] sm:$0xf] %v1166
    %1295 = vst [vmem:[#allocation2 + $0xe0] sm:$0xf] %v1167
    %1296 = vst [vmem:[#allocation2 + $0xe4] sm:$0xf] %v1168
    %1297 = vst [vmem:[#allocation2 + $0xe8] sm:$0xf] %v1169
    %1298 = vst [vmem:[#allocation2 + $0xec] sm:$0xf] %v1170
    %1299 = vst [vmem:[#allocation2 + $0xf0] sm:$0xf] %v1171
    %1300 = vst [vmem:[#allocation2 + $0xf4] sm:$0xf] %v1172
    %1301 = vst [vmem:[#allocation2 + $0xf8] sm:$0xf] %v1173
    %1302 = vst [vmem:[#allocation2 + $0xfc] sm:$0xf] %v1174
    // Predicated region
    $region22: #{tpu_custom_call.1} parent=1 // pred_check
      _
    $region23: #{tpu_custom_call.1} parent=1 // pred_check_branch
      %1304 = sbr.rel (0) target = $region25
    $region24: #{tpu_custom_call.1} parent=1 // pred_region
      %s1306 = ssub.s32 4096, 4096
      %1307 = vsyncadd [#allocation3], %s1306
      %s1308 = sshll.u32 [#allocation2], 4
      %s1309 = int_to_ptr.vmem [resolvable:$true] %s1308
      %1314 = dma.vmem_to_hbm [thread:$0]  %s1309, 4096, %s5, [#allocation3], 64, 64, 4
    $region25: #{tpu_custom_call.1} parent=1 // pred_fallthru
      _
    // Predicated region
    $region26: #{tpu_custom_call.1} parent=1 // pred_check
      _
    $region27: #{tpu_custom_call.1} parent=1 // pred_check_branch
      %1316 = sbr.rel (0) target = $region29
    $region28: #{tpu_custom_call.1} parent=1 // pred_region
      %1317 = dma.done [#allocation3], 4096
    $region29: #{tpu_custom_call.1} parent=1 // pred_fallthru
      _
    %1318 = vsyncpa [#allocation3], 1

</llo_original>
